<compile_context>
chip_gen: v7x
topology: tpu7x:2x2x1
jax: 0.10.0
libtpu: 0.0.40
codegen_flags: <defaults>
</compile_context>

<pallas_src>
import jax
import jax.numpy as jnp
import numpy as np
from jax.experimental import pallas as pl
from jax.experimental.pallas import tpu as pltpu

EPS = 1e-5


# ---------------------------------------------------------------------------
# Kernel 1: shared projection for the FullyConnected layer.
#   ac[b] = concat(z0[b], z1[b]) @ W_fc^T     (bias folded in later, in glue)
# One small (L0+L1, Din) x (Din, H) MXU matmul per batch element.
# ---------------------------------------------------------------------------
def _project_kernel(zc_ref, wt_ref, ac_ref):
    # zc_ref: (1, L0+L1, Din)   wt_ref: (Din, H)   ac_ref: (1, L0+L1, H)
    ac_ref[0] = jnp.dot(zc_ref[0], wt_ref[...],
                        preferred_element_type=jnp.float32)


def fc_project(zc, w_fc):
    B, L, Din = zc.shape
    H = w_fc.shape[0]
    return pl.pallas_call(
        _project_kernel,
        out_shape=jax.ShapeDtypeStruct((B, L, H), jnp.float32),
        grid=(B,),
        in_specs=[
            pl.BlockSpec((1, L, Din), lambda b: (b, 0, 0)),
            pl.BlockSpec((Din, H), lambda b: (0, 0)),
        ],
        out_specs=pl.BlockSpec((1, L, H), lambda b: (b, 0, 0)),
        compiler_params=pltpu.CompilerParams(
            dimension_semantics=("parallel",)),
    )(zc, w_fc.T)


# ---------------------------------------------------------------------------
# Kernel 2 (fused hot path): pairwise combine + BN1 + ReLU + 3x3 Conv2d.
# The (B, L0, L1, H) hidden map only ever exists one row-tile at a time in
# VMEM; inputs are the tiny per-batch projections a0 (BN-folded, -1e30 row
# padded) and a1 (BN-scaled).  Grid = (batch, row tiles), both parallel.
# ---------------------------------------------------------------------------
def _bn_relu_conv_kernel(a0p_ref, a1s_ref, wc_ref, bc_ref, s_ref, cpad_ref):
    # a0p_ref: (1, L0+2, H)  BN-folded z0 projection, rows padded with -1e30
    # a1s_ref: (1, L1, H)    BN-scaled z1 projection
    # wc_ref:  (9, H)        symmetrized 3x3 conv weight, tap-major
    # bc_ref:  SMEM (1,)     conv bias
    # s_ref:   (1, T, L1)    pre-BN2 conv output row tile
    # cpad_ref:(T+2, L1+2, H) VMEM scratch; column ring kept at zero
    t = pl.program_id(1)
    T = s_ref.shape[1]
    L1 = a1s_ref.shape[1]
    H = a1s_ref.shape[2]

    start = pl.multiple_of(t * T, T)
    slab = a0p_ref[0, pl.ds(start, T + 2), :]          # (T+2, H) incl. halo
    a1b = a1s_ref[0]                                   # (L1, H)

    # BN1 + ReLU + pairwise combine, recomputed on the fly (y never hits HBM).
    # Rows outside [0, L0) carry -1e30 in a0p, so ReLU maps them to exact 0
    # (= the conv's zero padding).
    c = jnp.maximum(slab[:, None, :] + a1b[None, :, :], 0.0)   # (T+2, L1, H)

    # Zero only the 1-wide column ring; the interior is fully overwritten.
    zring = jnp.zeros((T + 2, 1, H), jnp.float32)
    cpad_ref[:, 0:1, :] = zring
    cpad_ref[:, L1 + 1:L1 + 2, :] = zring
    cpad_ref[:, 1:L1 + 1, :] = c

    # 3x3 conv: accumulate 9 weighted shifted slabs on the VPU (weights
    # broadcast along the lane-minor H axis), then a single cross-lane
    # H-reduction — instead of 9 per-tap XLU reductions.
    acc3 = jnp.zeros((T, L1, H), jnp.float32)
    for k in range(9):                                  # unrolled taps
        di, dj = k // 3, k % 3
        shifted = cpad_ref[di:di + T, dj:dj + L1, :]    # (T, L1, H)
        wk = wc_ref[k:k + 1, :][None]                   # (1, 1, H)
        acc3 = acc3 + shifted * wk
    s_ref[0] = jnp.sum(acc3, axis=-1) + bc_ref[0]


def bn_relu_conv(a0p, a1s, wc_off, conv_b, *, row_tile):
    B, L0p2, H = a0p.shape
    L0 = L0p2 - 2
    L1 = a1s.shape[1]
    T = row_tile
    nT = L0 // T
    return pl.pallas_call(
        _bn_relu_conv_kernel,
        out_shape=jax.ShapeDtypeStruct((B, L0, L1), jnp.float32),
        grid=(B, nT),
        in_specs=[
            pl.BlockSpec((1, L0 + 2, H), lambda b, t: (b, 0, 0)),
            pl.BlockSpec((1, L1, H), lambda b, t: (b, 0, 0)),
            pl.BlockSpec((9, H), lambda b, t: (0, 0)),
            pl.BlockSpec(memory_space=pltpu.SMEM),
        ],
        out_specs=pl.BlockSpec((1, T, L1), lambda b, t: (b, t, 0)),
        scratch_shapes=[pltpu.VMEM((T + 2, L1 + 2, H), jnp.float32)],
        compiler_params=pltpu.CompilerParams(
            dimension_semantics=("parallel", "parallel"),
            vmem_limit_bytes=48 * 1024 * 1024),
    )(a0p, a1s, wc_off, conv_b.reshape(1))


# ---------------------------------------------------------------------------
# Kernel 3: BatchNorm2d (folded to scale/shift) + Sigmoid, per-batch tiles.
# ---------------------------------------------------------------------------
def _bn_sigmoid_kernel(s_ref, ab_ref, o_ref):
    # ab_ref: SMEM (2,) = [scale, shift]
    o_ref[...] = jax.nn.sigmoid(s_ref[...] * ab_ref[0] + ab_ref[1])


def bn_sigmoid(s_pre, scale, shift):
    B, L0, L1 = s_pre.shape
    ab = jnp.stack([scale, shift]).astype(jnp.float32)
    return pl.pallas_call(
        _bn_sigmoid_kernel,
        out_shape=jax.ShapeDtypeStruct((B, L0, L1), jnp.float32),
        grid=(B,),
        in_specs=[
            pl.BlockSpec((1, L0, L1), lambda b: (b, 0, 0)),
            pl.BlockSpec(memory_space=pltpu.SMEM),
        ],
        out_specs=pl.BlockSpec((1, L0, L1), lambda b: (b, 0, 0)),
        compiler_params=pltpu.CompilerParams(
            dimension_semantics=("parallel",)),
    )(s_pre, ab)


def _pick_row_tile(L0):
    # Largest divisor of L0 among TPU-friendly tile heights, capped at 64 so
    # the per-step working set stays well inside v7x's 64 MiB VMEM.
    for T in (64, 32, 16, 8):
        if T <= L0 and L0 % T == 0:
            return T
    return L0


# ---------------------------------------------------------------------------
# Full ContactCNN forward
# ---------------------------------------------------------------------------
def contact_cnn_forward(z0, z1, params):
    w_fc, b_fc = params["w_fc"], params["b_fc"]
    gamma1, beta1 = params["bn1_gamma"], params["bn1_beta"]
    wc, bc = params["conv_w"], params["conv_b"]
    gamma2, beta2 = params["bn2_gamma"], params["bn2_beta"]

    B, L0, Din = z0.shape
    L1 = z1.shape[1]
    H = w_fc.shape[0]

    # FullyConnected via distributivity: one small matmul per batch element.
    zc = jnp.concatenate([z0, z1], axis=1)              # (B, L0+L1, Din)
    ac = fc_project(zc, w_fc)                           # (B, L0+L1, H)
    a0 = ac[:, :L0, :] + b_fc                           # bias folded once
    a1 = ac[:, L0:, :]

    # BatchNorm1d training-mode (biased) statistics of y[b,i,j] = a0[b,i]+a1[b,j],
    # computed analytically from moments of a0 / a1 (tiny glue reductions).
    mu0 = a0.mean(axis=(0, 1))
    mu1 = a1.mean(axis=(0, 1))
    mean1 = mu0 + mu1
    c0 = a0 - mu0
    c1 = a1 - mu1
    cross = (c0.mean(axis=1) * c1.mean(axis=1)).mean(axis=0)
    var1 = (c0 ** 2).mean(axis=(0, 1)) + (c1 ** 2).mean(axis=(0, 1)) + 2.0 * cross

    scale1 = gamma1 * jax.lax.rsqrt(var1 + EPS)
    shift1 = beta1 - mean1 * scale1
    a0s = a0 * scale1 + shift1                          # (B, L0, H)
    a1s = a1 * scale1                                   # (B, L1, H)
    # -1e30 row padding => ReLU yields exact zeros for rows outside the map.
    a0p = jnp.pad(a0s, ((0, 0), (1, 1), (0, 0)), constant_values=-1e30)

    # clip(): symmetrize the conv weight across its spatial dims, then lay it
    # out tap-major as (9, H): wc_off[di*3+dj, h] = wc_sym[0, h, di, dj]
    wc_sym = 0.5 * (wc + jnp.transpose(wc, (0, 1, 3, 2)))
    wc_off = jnp.transpose(wc_sym[0], (1, 2, 0)).reshape(9, H)

    # Fused pairwise-combine + BN1 + ReLU + symmetric 3x3 conv (Pallas kernel)
    T = _pick_row_tile(L0)
    s_pre = bn_relu_conv(a0p, a1s, wc_off, bc, row_tile=T)   # (B, L0, L1)

    # BatchNorm2d training-mode stats over the single output channel (glue).
    mean2 = s_pre.mean()
    var2 = jnp.mean((s_pre - mean2) ** 2)
    scale2 = gamma2[0] * jax.lax.rsqrt(var2 + EPS)
    shift2 = beta2[0] - mean2 * scale2

    # BN2 + Sigmoid (Pallas elementwise kernel); squeeze(1) is implicit since
    # the kernels never carry the singleton channel axis.
    return bn_sigmoid(s_pre, scale2, shift2)

    # TODO(synk): forward/backward hooks (save_output/save_grad) and the
    # BatchNorm running-stat updates are stateful side effects with no impact
    # on the forward output; they are not modeled here.


# ---------------------------------------------------------------------------
# Pure-JAX reference (mirrors PyTorch semantics) for verification.
# ---------------------------------------------------------------------------
def reference_forward(z0, z1, params):
    w_fc, b_fc = params["w_fc"], params["b_fc"]
    gamma1, beta1 = params["bn1_gamma"], params["bn1_beta"]
    wc, bc = params["conv_w"], params["conv_b"]
    gamma2, beta2 = params["bn2_gamma"], params["bn2_beta"]
    H = w_fc.shape[0]

    combined = z0[:, :, None, :] + z1[:, None, :, :]        # (B, L0, L1, Din)
    y = jnp.einsum("blmd,hd->blmh", combined, w_fc) + b_fc
    flat = y.reshape(-1, H)
    mean1, var1 = flat.mean(0), flat.var(0)
    c = (y - mean1) / jnp.sqrt(var1 + EPS) * gamma1 + beta1
    c = jnp.maximum(c, 0.0)

    cn = jnp.transpose(c, (0, 3, 1, 2))                     # NCHW
    wc_sym = 0.5 * (wc + jnp.transpose(wc, (0, 1, 3, 2)))
    s = jax.lax.conv_general_dilated(
        cn, wc_sym, (1, 1), "SAME",
        dimension_numbers=("NCHW", "OIHW", "NCHW")) + bc[0]
    m2 = s.mean()
    v2 = jnp.mean((s - m2) ** 2)
    s = (s - m2) / jnp.sqrt(v2 + EPS) * gamma2[0] + beta2[0]
    return jax.nn.sigmoid(s)[:, 0]


if __name__ == "__main__":
    B, L0, L1 = 2, 16, 16
    in_dim, hidden = 32, 32

    key = jax.random.PRNGKey(0)
    ks = jax.random.split(key, 6)
    z0 = jax.random.normal(ks[0], (B, L0, in_dim), jnp.float32)
    z1 = jax.random.normal(ks[1], (B, L1, in_dim), jnp.float32)

    params = dict(
        w_fc=jax.random.normal(ks[2], (hidden, in_dim), jnp.float32) * 0.1,
        b_fc=jax.random.normal(ks[3], (hidden,), jnp.float32) * 0.1,
        bn1_gamma=jnp.ones((hidden,), jnp.float32),   # PyTorch BN default init
        bn1_beta=jnp.zeros((hidden,), jnp.float32),
        conv_w=jax.random.normal(ks[4], (1, hidden, 3, 3), jnp.float32) * 0.1,
        conv_b=jax.random.normal(ks[5], (1,), jnp.float32) * 0.1,
        bn2_gamma=jnp.ones((1,), jnp.float32),
        bn2_beta=jnp.zeros((1,), jnp.float32),
    )

    out = jax.block_until_ready(contact_cnn_forward(z0, z1, params))
    ref = jax.block_until_ready(reference_forward(z0, z1, params))

    assert out.shape == (B, L0, L1), out.shape
    np.testing.assert_allclose(np.asarray(out), np.asarray(ref),
                               rtol=2e-3, atol=2e-3)
    print("KERNEL_OK")
</pallas_src>

<mosaic_0001>
module attributes {stable_mosaic.version = 11 : i64} {
  func.func @_project_kernel(%arg0: i32, %arg1: memref<1x32x32xf32, #tpu.memory_space<vmem>>, %arg2: memref<32x32xf32, #tpu.memory_space<vmem>>, %arg3: memref<1x32x32xf32, #tpu.memory_space<vmem>>) attributes {dimension_semantics = [#tpu.dimension_semantics<parallel>], iteration_bounds = array<i64: 2>, scalar_prefetch = 0 : i64, scratch_operands = 0 : i64, tpu.core_type = #tpu.core_type<tc>, window_params = [{transform_indices = @transform_0, window_bounds = array<i64: 1, 32, 32>}, {pipeline_mode = #tpu.pipeline_mode<synchronous>, transform_indices = @transform_1, window_bounds = array<i64: 32, 32>}, {transform_indices = @transform_2, window_bounds = array<i64: 1, 32, 32>}]} {
    %c0 = arith.constant 0 : index
    %c0_0 = arith.constant 0 : index
    %c0_1 = arith.constant 0 : index
    %0 = vector.load %arg1[%c0, %c0_0, %c0_1] : memref<1x32x32xf32, #tpu.memory_space<vmem>>, vector<1x32x32xf32>
    %1 = vector.shape_cast %0 : vector<1x32x32xf32> to vector<32x32xf32>
    %c0_2 = arith.constant 0 : index
    %c0_3 = arith.constant 0 : index
    %2 = vector.load %arg2[%c0_2, %c0_3] : memref<32x32xf32, #tpu.memory_space<vmem>>, vector<32x32xf32>
    %cst = arith.constant dense<0.000000e+00> : vector<32x32xf32>
    %3 = tpu.matmul %1, %2, %cst {dimension_numbers = #tpu.dot_dimension_numbers<[1], [0], [0], [1], [0, 0, 1, 1], [], []>} : vector<32x32xf32>, vector<32x32xf32>, vector<32x32xf32> -> vector<32x32xf32>
    %c0_4 = arith.constant 0 : index
    %c0_5 = arith.constant 0 : index
    %c0_6 = arith.constant 0 : index
    %4 = vector.load %arg3[%c0_4, %c0_5, %c0_6] : memref<1x32x32xf32, #tpu.memory_space<vmem>>, vector<1x32x32xf32>
    %5 = vector.shape_cast %4 : vector<1x32x32xf32> to vector<32x32xf32>
    %6 = vector.shape_cast %3 : vector<32x32xf32> to vector<1x32x32xf32>
    tpu.vector_store %arg3[%c0_4, %c0_5, %c0_6], %6 {strides = array<i32>} : memref<1x32x32xf32, #tpu.memory_space<vmem>>, vector<1x32x32xf32>,
    return
  }
  func.func @transform_0(%arg0: i32) -> (i32, i32, i32) {
    %c0_i32 = arith.constant 0 : i32
    %c0_i32_0 = arith.constant 0 : i32
    %c0_i32_1 = arith.constant 0 : i32
    return %arg0, %c0_i32, %c0_i32_0 : i32, i32, i32
  }
  func.func @transform_1(%arg0: i32) -> (i32, i32) {
    %c0_i32 = arith.constant 0 : i32
    %c0_i32_0 = arith.constant 0 : i32
    %c0_i32_1 = arith.constant 0 : i32
    return %c0_i32, %c0_i32_0 : i32, i32
  }
  func.func @transform_2(%arg0: i32) -> (i32, i32, i32) {
    %c0_i32 = arith.constant 0 : i32
    %c0_i32_0 = arith.constant 0 : i32
    %c0_i32_1 = arith.constant 0 : i32
    return %arg0, %c0_i32, %c0_i32_0 : i32, i32, i32
  }
}

</mosaic_0001>

<llo_original>
// kernel: tpu_custom_call.1
$region0: #{tpu_custom_call.1}
  #allocation0 [shape = 'u32[]', space=smem, size = 0x4, offset = 0x4, fixed_abs, tag = 'smem constant byte address 0x4 - core index']
  #allocation1 [shape = 'u32[144,128]{1,0:T(1,128)}', space=vmem, size = 0x12000, scoped, tag = 'internal scratch']
  %s0 = inlined_call_operand.hbm [shape: f32[2,32,32], index: 0, kind: input, shape index: {}]
  %s1 = inlined_call_operand.hbm [shape: f32[32,32], index: 1, kind: input, shape index: {}]
  %s2 = inlined_call_operand.hbm [shape: f32[2,32,32], index: 2, kind: output, shape index: {}]
  %s3 = sld [smem:[#allocation0]]
  $region49: #{tpu_custom_call.1} parent=0
    _
  %s5 = ssub.s32 1, %s3
  %s6 = scalar_select 0, %s5, %s3
  $region1: #{tpu_custom_call.1} parent=0
    #allocation2 [shape = 'u8[32768]{0}', space=vmem, size = 0x8000, scoped, tag = 'input window, operand 0']
    #allocation3 [shape = 's32[2]{0}', space=sflag, size = 0x8, scoped, tag = 'scoped memory for tpu_custom_call.1']
    #allocation4 [shape = 's32[2]{0}', space=sflag, size = 0x8, scoped, tag = 'scoped memory for tpu_custom_call.1']
    #allocation5 [shape = 'u8[16384]{0}', space=vmem, size = 0x4000, scoped, tag = 'input window, operand 1, single buffered']
    #allocation6 [shape = 's32[1]{0}', space=sflag, size = 0x4, scoped, tag = 'scoped memory for tpu_custom_call.1']
    #allocation7 [shape = 'u8[32768]{0}', space=vmem, size = 0x8000, scoped, tag = 'output window, operand 0']
    %7 = vsyncpa [#allocation3], 0
    %s8 = scalar_lea.sflag [#allocation3], 1
    %9 = vsyncpa %s8, 0
    %10 = vsyncpa [#allocation6], 0
    %11 = vsyncpa [#allocation4], 0
    %s12 = scalar_lea.sflag [#allocation4], 1
    %13 = vsyncpa %s12, 0
    loop: start=0, step=1, limit=4
    $region2: #{tpu_custom_call.1} parent=1 // loop_pre_header
      _
    $region3: #{tpu_custom_call.1} parent=1 // loop_header
      %s15 = sphi 0, %s19
      %p16 = scmp.ge.s32.totalorder %s15, 4
      %s25 = sphi 0, %s27
      %s28 = sphi 0, %s25
      %s29 = sphi 0, %s28
      %s45 = sphi 0, %s29
      %s49 = sphi 0, %s49
      %s51 = sphi 0, %s49
      %s52 = sphi 0, %s51
      %s66 = sphi 0, %s52
      %s72 = sphi 0, %s74
      %s75 = sphi 0, %s72
      %s76 = sphi 0, %s75
      %s92 = sphi 0, %s76
    $region4: #{tpu_custom_call.1} parent=1 // loop_header_branch
      %18 = sbr.rel (%p16) target = $region8
    $region5: #{tpu_custom_call.1} parent=1 // loop_body
      %s20 = ssub.s32 %s15, 1
      %s21 = ssub.s32 %s15, 2
      %s22 = sadd.s32 %s15, 1
      %s23 = ssub.s32 %s15, %s22
      %p24 = scmp.eq.s32.totalorder %s23, 0
      %s26 = sadd.s32 %s25, 1
      %s27 = scalar_select %p24, %s25, %s26
      %p30 = pneg %p24
      %p31 = scmp.eq.s32.totalorder %s15, 1
      %p32 = por %p30, %p31
      %p33 = scmp.ne.s32.totalorder %s25, %s28
      %p34 = scmp.eq.s32.totalorder %s15, 0
      %p35 = por %p33, %p34
      %p36 = scmp.ne.s32.totalorder %s25, %s28
      %p37 = scmp.eq.s32.totalorder %s20, 1
      %p38 = por %p36, %p37
      %p39 = scmp.ne.s32.totalorder %s28, %s29
      %p40 = scmp.eq.s32.totalorder %s20, 0
      %p41 = por %p39, %p40
      %p42 = scmp.ne.s32.totalorder %s28, %s29
      %p43 = scmp.eq.s32.totalorder %s21, 1
      %p44 = por %p42, %p43
      %p46 = scmp.ne.s32.totalorder %s29, %s45
      %p47 = scmp.eq.s32.totalorder %s21, 0
      %p48 = por %p46, %p47
      %s50 = sadd.s32 %s49, 1
      %p53 = scmp.eq.s32.totalorder %s15, 1
      %p54 = scmp.ne.s32.totalorder %s49, %s51
      %p55 = scmp.eq.s32.totalorder %s15, 0
      %p56 = por %p54, %p55
      %p57 = scmp.ne.s32.totalorder %s49, %s51
      %p58 = scmp.eq.s32.totalorder %s20, 1
      %p59 = por %p57, %p58
      %p60 = scmp.ne.s32.totalorder %s51, %s52
      %p61 = scmp.eq.s32.totalorder %s20, 0
      %p62 = por %p60, %p61
      %p63 = scmp.ne.s32.totalorder %s51, %s52
      %p64 = scmp.eq.s32.totalorder %s21, 1
      %p65 = por %p63, %p64
      %p67 = scmp.ne.s32.totalorder %s52, %s66
      %p68 = scmp.eq.s32.totalorder %s21, 0
      %p69 = por %p67, %p68
      %s70 = ssub.s32 %s15, %s22
      %p71 = scmp.eq.s32.totalorder %s70, 0
      %s73 = sadd.s32 %s72, 1
      %s74 = scalar_select %p71, %s72, %s73
      %p77 = pneg %p71
      %p78 = scmp.eq.s32.totalorder %s15, 1
      %p79 = por %p77, %p78
      %p80 = scmp.ne.s32.totalorder %s72, %s75
      %p81 = scmp.eq.s32.totalorder %s15, 0
      %p82 = por %p80, %p81
      %p83 = scmp.ne.s32.totalorder %s72, %s75
      %p84 = scmp.eq.s32.totalorder %s20, 1
      %p85 = por %p83, %p84
      %p86 = scmp.ne.s32.totalorder %s75, %s76
      %p87 = scmp.eq.s32.totalorder %s20, 0
      %p88 = por %p86, %p87
      %p89 = scmp.ne.s32.totalorder %s75, %s76
      %p90 = scmp.eq.s32.totalorder %s21, 1
      %p91 = por %p89, %p90
      %p93 = scmp.ne.s32.totalorder %s76, %s92
      %p94 = scmp.eq.s32.totalorder %s21, 0
      %p95 = por %p93, %p94
      %p96 = scmp.le.s32.totalorder 1, %s15
      %p97 = scmp.lt.s32.totalorder %s15, 3
      %p98 = pnand %p96, %p97
      %p99 = pneg %p98
      // Predicated region
      $region9: #{tpu_custom_call.1} parent=5 // pred_check
        _
      $region10: #{tpu_custom_call.1} parent=5 // pred_check_branch
        %101 = sbr.rel (%p98) target = $region12
      $region11: #{tpu_custom_call.1} parent=5 // pred_region
        %s102 = ssub.s32 %s15, 1
        // Predicated region
        $region13: #{tpu_custom_call.1} parent=11 // pred_check
          %p103 = pneg %p62
        $region14: #{tpu_custom_call.1} parent=11 // pred_check_branch
          %105 = sbr.rel (%p103) target = $region16
        $region15: #{tpu_custom_call.1} parent=11 // pred_region
          %s107 = ssub.s32 512, 512
          %108 = vsyncadd [#allocation6], %s107
          %s109 = sshll.u32 [#allocation5], 4
          %s110 = int_to_ptr.vmem [resolvable:$true] %s109
          %115 = dma.hbm_to_vmem [thread:$0]  %s1, 512, %s110, [#allocation6], 128, 128, 8
        $region16: #{tpu_custom_call.1} parent=11 // pred_fallthru
          _
      $region12: #{tpu_custom_call.1} parent=5 // pred_fallthru
        _
      %p116 = scmp.lt.s32.totalorder %s15, 2
      // Predicated region
      $region17: #{tpu_custom_call.1} parent=5 // pred_check
        %p117 = pneg %p116
      $region18: #{tpu_custom_call.1} parent=5 // pred_check_branch
        %119 = sbr.rel (%p117) target = $region20
      $region19: #{tpu_custom_call.1} parent=5 // pred_region
        // Predicated region
        $region21: #{tpu_custom_call.1} parent=19 // pred_check
          %p120 = pneg %p35
        $region22: #{tpu_custom_call.1} parent=19 // pred_check_branch
          %122 = sbr.rel (%p120) target = $region24
        $region23: #{tpu_custom_call.1} parent=19 // pred_region
          %s123 = sand.u32 %s25, 1
          %s124 = scalar_lea.sflag [#allocation3], %s123
          %s125 = sand.u32 %s25, 1
          %s126 = smul.addr %s125, 32
          %s127 = scalar_lea.vmem [#allocation2], %s126
          %s129 = ssub.s32 512, 512
          %130 = vsyncadd %s124, %s129
          %s131 = smul.addr %s15, 4
          %s132 = smul.addr %s131, 128
          %s133 = scalar_lea.hbm %s0, %s132
          %s134 = sshll.u32 %s127, 4
          %s135 = int_to_ptr.vmem [resolvable:$true] %s134
          %140 = dma.hbm_to_vmem [thread:$0]  %s133, 512, %s135, %s124, 128, 128, 8
        $region24: #{tpu_custom_call.1} parent=19 // pred_fallthru
          _
      $region20: #{tpu_custom_call.1} parent=5 // pred_fallthru
        _
      %p141 = scmp.le.s32.totalorder 1, %s15
      %p142 = scmp.lt.s32.totalorder %s15, 3
      %p143 = pnand %p141, %p142
      %p144 = pneg %p143
      // Predicated region
      $region25: #{tpu_custom_call.1} parent=5 // pred_check
        _
      $region26: #{tpu_custom_call.1} parent=5 // pred_check_branch
        %146 = sbr.rel (%p143) target = $region28
      $region27: #{tpu_custom_call.1} parent=5 // pred_region
        %s147 = ssub.s32 %s15, 1
        %s148 = sand.u32 %s28, 1
        %s149 = scalar_lea.sflag [#allocation3], %s148
        %s150 = sand.u32 %s28, 1
        %s151 = smul.addr %s150, 32
        %s152 = scalar_lea.vmem [#allocation2], %s151
        // Predicated region
        $region29: #{tpu_custom_call.1} parent=27 // pred_check
          %p153 = pneg %p41
        $region30: #{tpu_custom_call.1} parent=27 // pred_check_branch
          %155 = sbr.rel (%p153) target = $region32
        $region31: #{tpu_custom_call.1} parent=27 // pred_region
          %156 = dma.done %s149, 512
        $region32: #{tpu_custom_call.1} parent=27 // pred_fallthru
          _
        // Predicated region
        $region33: #{tpu_custom_call.1} parent=27 // pred_check
          %p157 = pneg %p62
        $region34: #{tpu_custom_call.1} parent=27 // pred_check_branch
          %159 = sbr.rel (%p157) target = $region36
        $region35: #{tpu_custom_call.1} parent=27 // pred_region
          %160 = dma.done [#allocation6], 512
        $region36: #{tpu_custom_call.1} parent=27 // pred_fallthru
          _
        %s161 = sand.u32 %s28, 1
        %s162 = scalar_lea.sflag [#allocation3], %s161
        %s163 = sand.u32 %s28, 1
        %s164 = smul.addr %s163, 32
        %s165 = scalar_lea.vmem [#allocation2], %s164
        %p166 = pneg %p41
        %p167 = pneg %p38
        %p168 = pneg %p62
        %p169 = pneg %p59
        %p170 = pneg %p88
        %p171 = pneg %p85
        %s172 = sand.u32 %s75, 1
        %s173 = scalar_lea.sflag [#allocation4], %s172
        %s174 = sand.u32 %s75, 1
        %s175 = smul.addr %s174, 32
        %s176 = scalar_lea.vmem [#allocation7], %s175
        %v177 = vld [vmem:[%s152] sm:$0xff]
        %v178 = vld [vmem:[%s152 + $0x8] sm:$0xff]
        %v179 = vld [vmem:[%s152 + $0x10] sm:$0xff]
        %v180 = vld [vmem:[%s152 + $0x18] sm:$0xff]
        %v181 = vld [vmem:[#allocation5] sm:$0xff]
        %v182 = vld [vmem:[#allocation5 + $0x8] sm:$0xff]
        %v183 = vld [vmem:[#allocation5 + $0x10] sm:$0xff]
        %v184 = vld [vmem:[#allocation5 + $0x18] sm:$0xff]
        %vm185 = vcmask 261120
        %v187 = vsel %vm185, %v177, 0
        %v190 = vsel %vm185, %v178, 0
        %v193 = vsel %vm185, %v179, 0
        %v196 = vsel %vm185, %v180, 0
        %198 = vmatprep.subr.mxu0 0.0
        %199 = vmatpush1.msra.mxu0 %v181
        %200 = vmatprep.subr.mxu0 0.0
        %201 = vmatpush1.msra.mxu0 %v182
        %202 = vmatprep.subr.mxu0 0.0
        %203 = vmatpush1.msra.mxu0 %v183
        %204 = vmatprep.subr.mxu0 0.0
        %205 = vmatpush1.msra.mxu0 %v184
        %206 = vmatprep.subr.mxu0 0.0
        %207 = vmatpush1.msra.mxu0 0.0
        %208 = vmatprep.subr.mxu0 0.0
        %209 = vmatpush1.msra.mxu0 0.0
        %210 = vmatprep.subr.mxu0 0.0
        %211 = vmatpush1.msra.mxu0 0.0
        %212 = vmatprep.subr.mxu0 0.0
        %213 = vmatpush1.msra.mxu0 0.0
        %214 = vmatprep.subr.mxu0 0.0
        %215 = vmatpush1.msra.mxu0 0.0
        %216 = vmatprep.subr.mxu0 0.0
        %217 = vmatpush1.msra.mxu0 0.0
        %218 = vmatprep.subr.mxu0 0.0
        %219 = vmatpush1.msra.mxu0 0.0
        %220 = vmatprep.subr.mxu0 0.0
        %221 = vmatpush1.msra.mxu0 0.0
        %222 = vmatprep.subr.mxu0 0.0
        %223 = vmatpush1.msra.mxu0 0.0
        %224 = vmatprep.subr.mxu0 0.0
        %225 = vmatpush1.msra.mxu0 0.0
        %226 = vmatprep.subr.mxu0 0.0
        %227 = vmatpush1.msra.mxu0 0.0
        %228 = vmatprep.subr.mxu0 0.0
        %229 = vmatpush1.msra.mxu0 0.0
        %230 = vmatprep.subr.mxu0 0.0
        %231 = vmatpush1.msra.mxu0 0.0
        %232 = vmatprep.subr.mxu0 0.0
        %233 = vmatpush1.msra.mxu0 0.0
        %234 = vmatprep.subr.mxu0 0.0
        %235 = vmatpush1.msra.mxu0 0.0
        %236 = vmatprep.subr.mxu0 0.0
        %237 = vmatpush1.msra.mxu0 0.0
        %238 = vmatprep.subr.mxu0 0.0
        %239 = vmatpush1.msra.mxu0 0.0
        %240 = vmatprep.subr.mxu0 0.0
        %241 = vmatpush1.msra.mxu0 0.0
        %242 = vmatprep.subr.mxu0 0.0
        %243 = vmatpush1.msra.mxu0 0.0
        %244 = vmatprep.subr.mxu0 0.0
        %245 = vmatpush1.msra.mxu0 0.0
        %246 = vmatprep.subr.mxu0 0.0
        %247 = vmatpush1.msra.mxu0 0.0
        %248 = vmatprep.subr.mxu0 0.0
        %249 = vmatpush1.msra.mxu0 0.0
        %250 = vmatprep.subr.mxu0 0.0
        %251 = vmatpush1.msra.mxu0 0.0
        %252 = vmatprep.subr.mxu0 0.0
        %253 = vmatpush1.msra.mxu0 0.0
        %254 = vmatprep.subr.mxu0 0.0
        %255 = vmatpush1.msra.mxu0 0.0
        %256 = vmatprep.subr.mxu0 0.0
        %257 = vmatpush1.msra.mxu0 0.0
        %258 = vmatprep.subr.mxu0 0.0
        %259 = vmatpush1.msra.mxu0 0.0
        %260 = vmatprep.subr.mxu0 0.0
        %261 = vmatpush1.msra.mxu0 0.0
        %262 = vmatprep.mubr.f32.mxu0 0.0
        %263 = vmatmul.mubr.f32.gmra.mrb[0].mxu0 %v187
        %v264 = vpop.f32.mrb[0].mxu0
        %v265 = vadd.f32 0.0, %v264
        %v266 = vpop.f32.mrb[0].mxu0
        %267 = vmatprep.mubr.f32.mxu0 0.0
        %268 = vmatmul.mubr.f32.gmra.mrb[0].mxu0 %v190
        %v269 = vpop.f32.mrb[0].mxu0
        %v270 = vadd.f32 0.0, %v269
        %v271 = vpop.f32.mrb[0].mxu0
        %272 = vmatprep.mubr.f32.mxu0 0.0
        %273 = vmatmul.mubr.f32.gmra.mrb[0].mxu0 %v193
        %v274 = vpop.f32.mrb[0].mxu0
        %v275 = vadd.f32 0.0, %v274
        %v276 = vpop.f32.mrb[0].mxu0
        %277 = vmatprep.mubr.f32.mxu0 0.0
        %278 = vmatmul.mubr.f32.gmra.mrb[0].mxu0 %v196
        %v279 = vpop.f32.mrb[0].mxu0
        %v280 = vadd.f32 0.0, %v279
        %v281 = vpop.f32.mrb[0].mxu0
        %282 = vdwg.mxu0
        %283 = vst.msk [vmem:[%s176] sm:$0xff] %vm185, %v265
        %284 = vst.msk [vmem:[%s176 + $0x8] sm:$0xff] %vm185, %v270
        %285 = vst.msk [vmem:[%s176 + $0x10] sm:$0xff] %vm185, %v275
        %286 = vst.msk [vmem:[%s176 + $0x18] sm:$0xff] %vm185, %v280
        %s287 = sand.u32 %s75, 1
        %s288 = scalar_lea.sflag [#allocation4], %s287
        %s289 = sand.u32 %s75, 1
        %s290 = smul.addr %s289, 32
        %s291 = scalar_lea.vmem [#allocation7], %s290
        // Predicated region
        $region37: #{tpu_custom_call.1} parent=27 // pred_check
          %p292 = pneg %p85
        $region38: #{tpu_custom_call.1} parent=27 // pred_check_branch
          %294 = sbr.rel (%p292) target = $region40
        $region39: #{tpu_custom_call.1} parent=27 // pred_region
          %s296 = ssub.s32 512, 512
          %297 = vsyncadd %s288, %s296
          %s298 = smul.addr %s20, 4
          %s299 = smul.addr %s298, 128
          %s300 = scalar_lea.hbm %s2, %s299
          %s301 = sshll.u32 %s291, 4
          %s302 = int_to_ptr.vmem [resolvable:$true] %s301
          %307 = dma.vmem_to_hbm [thread:$0]  %s302, 512, %s300, %s288, 128, 128, 8
        $region40: #{tpu_custom_call.1} parent=27 // pred_fallthru
          _
      $region28: #{tpu_custom_call.1} parent=5 // pred_fallthru
        _
      %p308 = scmp.le.s32.totalorder 2, %s15
      // Predicated region
      $region41: #{tpu_custom_call.1} parent=5 // pred_check
        %p309 = pneg %p308
      $region42: #{tpu_custom_call.1} parent=5 // pred_check_branch
        %311 = sbr.rel (%p309) target = $region44
      $region43: #{tpu_custom_call.1} parent=5 // pred_region
        %s312 = ssub.s32 %s15, 2
        // Predicated region
        $region45: #{tpu_custom_call.1} parent=43 // pred_check
          %p313 = pneg %p91
        $region46: #{tpu_custom_call.1} parent=43 // pred_check_branch
          %315 = sbr.rel (%p313) target = $region48
        $region47: #{tpu_custom_call.1} parent=43 // pred_region
          %s316 = sand.u32 %s76, 1
          %s317 = scalar_lea.sflag [#allocation4], %s316
          %s318 = sand.u32 %s76, 1
          %s319 = smul.addr %s318, 32
          %s320 = scalar_lea.vmem [#allocation7], %s319
          %321 = dma.done %s317, 512
        $region48: #{tpu_custom_call.1} parent=43 // pred_fallthru
          _
      $region44: #{tpu_custom_call.1} parent=5 // pred_fallthru
        _
    $region6: #{tpu_custom_call.1} parent=1 // loop_footer
      %s19 = sadd.s32 1, %s15
    $region7: #{tpu_custom_call.1} parent=1 // loop_footer_branch
      %14 = sbr.rel target = $region3
    $region8: #{tpu_custom_call.1} parent=1 // loop_exit
      _
    %322 = vsyncpa [#allocation3], 1
    %s323 = scalar_lea.sflag [#allocation3], 1
    %324 = vsyncpa %s323, 1
    %325 = vsyncpa [#allocation6], 1
    %326 = vsyncpa [#allocation4], 1
    %s327 = scalar_lea.sflag [#allocation4], 1
    %328 = vsyncpa %s327, 1

</llo_original>
